<compile_context>
chip_gen: v6e
topology: v6e:2x2x1
jax: 0.10.0
libtpu: 0.0.40
codegen_flags: <defaults>
</compile_context>

<pallas_src>
import jax
import jax.numpy as jnp
from jax.experimental import pallas as pl
from jax.experimental.pallas import tpu as pltpu

# ---- model hyper-parameters (match TransH defaults) ----
ENT_NUM = 16
REL_NUM = 8
EMB_DIM = 32
BATCH   = 8
MARGIN  = 1.0
L_NORM  = 2          # PairwiseDistance p
C_REG   = 1.0
EPS     = 0.001
PD_EPS  = 1e-6       # torch.nn.PairwiseDistance default eps (added to the difference)


def _transh_loss_kernel(idx_ref, ent_ref, rel_ref, hyp_ref, out_ref):
    """All inputs resident in VMEM (tiny).

    idx_ref: (8B, 1) int32, rows = [heads(pos,neg); tails(pos,neg);
    relations(pos,neg)+E; hypers(pos,neg)+E+R] — i.e. row indices into the
    stacked [ent; rel; hyp] table.  One matmul gathers everything; scalar
    loss goes to SMEM."""
    b = BATCH
    b2, b4 = 2 * b, 4 * b
    b8 = 8 * b
    n_rows = ENT_NUM + 2 * REL_NUM

    ent = ent_ref[...]                                              # (E, D)
    rel = rel_ref[...]                                              # (R, D)
    hyp = hyp_ref[...]                                              # (R, D)
    all_idx = idx_ref[...]                                          # (8B, 1)

    # ---- Fused one-hot gather: ONE MXU dot yields [h; t; r; w]. ----
    table = jnp.concatenate([ent, rel, hyp], axis=0)                # (E+2R, D)
    lane = jax.lax.broadcasted_iota(jnp.int32, (b8, n_rows), 1)
    one_hot = (lane == all_idx).astype(jnp.float32)                 # (8B, E+2R)
    g = jax.lax.dot_general(
        one_hot, table,
        dimension_numbers=(((1,), (0,)), ((), ())),
        precision=jax.lax.Precision.HIGHEST,                        # keep f32 table exact
        preferred_element_type=jnp.float32)                         # (8B, D)

    ht = g[:b4]                                                     # (4B, D)  [h; t]
    r  = g[b4:b4 + b2]                                              # (2B, D)
    w  = g[b4 + b2:]                                                # (2B, D)
    ww = jnp.concatenate([w, w], axis=0)                            # (4B, D)  [w; w]

    # ---- Hyperplane projection: one reduce covers both head and tail. ----
    proj_dot = jnp.sum(ht * ww, axis=1, keepdims=True)              # (4B, 1)
    proj = ht - ww * proj_dot                                       # (4B, D)
    d = proj[:b2] + r - proj[b2:] + PD_EPS                          # (2B, D)
    if L_NORM == 1:
        score = jnp.sum(jnp.abs(d), axis=1, keepdims=True)          # (2B, 1)
    else:
        score = jnp.sqrt(jnp.sum(d * d, axis=1, keepdims=True))     # (2B, 1)
    margin_terms = jnp.maximum(score[:b] - score[b:] + MARGIN, 0.0)  # (B, 1)

    # ---- Regularizers: one fused cross-lane reduce over (E+2R, D). ----
    reg_block = jnp.concatenate([ent * ent, rel * hyp, rel * rel], axis=0)
    reg_red = jnp.sum(reg_block, axis=1, keepdims=True)             # (E+2R, 1)
    ent_sq = reg_red[:ENT_NUM]                                      # (E, 1) ||e||^2
    wr_dot = reg_red[ENT_NUM:ENT_NUM + REL_NUM]                     # (R, 1) <w, r>
    r_sq   = reg_red[ENT_NUM + REL_NUM:]                            # (R, 1) ||r||^2
    ent_terms  = jnp.maximum(jnp.sqrt(ent_sq) - 1.0, 0.0)           # (E, 1)
    orth_terms = jnp.maximum(wr_dot * jax.lax.rsqrt(r_sq) - EPS * EPS, 0.0)  # (R, 1)

    # ---- Final scalar: pre-scale each term group, one fused sublane reduce. ----
    total = jnp.concatenate(
        [margin_terms * (1.0 / b),
         ent_terms * (C_REG / ENT_NUM),
         orth_terms * (C_REG / REL_NUM)], axis=0)                   # (B+E+R, 1)
    out_ref[0, 0] = jnp.sum(total)


def transh_forward(pos_x, neg_x, entity_emb, relation_emb, relation_hyper):
    """pos_x, neg_x: (B, 3) int32 triples [head, relation, tail]."""
    # Build the single (8B, 1) index column in the wrapper (cheap int ops),
    # already offset into the stacked [ent; rel; hyp] gather table, so the
    # kernel has no index-extraction prologue.
    idx = jnp.concatenate([pos_x, neg_x], axis=0).astype(jnp.int32)   # (2B, 3)
    h_idx = idx[:, 0:1]
    r_idx = idx[:, 1:2]
    t_idx = idx[:, 2:3]
    all_idx = jnp.concatenate(
        [h_idx,                                   # head rows -> ent table
         t_idx,                                   # tail rows -> ent table
         r_idx + ENT_NUM,                         # relation rows -> rel table
         r_idx + ENT_NUM + REL_NUM], axis=0)      # hyper rows -> hyp table

    vmem = pl.BlockSpec(memory_space=pltpu.MemorySpace.VMEM)
    out = pl.pallas_call(
        _transh_loss_kernel,
        out_shape=jax.ShapeDtypeStruct((1, 1), jnp.float32),
        in_specs=[vmem] * 4,
        out_specs=pl.BlockSpec(memory_space=pltpu.MemorySpace.SMEM),
        compiler_params=pltpu.CompilerParams(vmem_limit_bytes=2 * 1024 * 1024),
        cost_estimate=pl.CostEstimate(
            flops=2 * 8 * BATCH * (ENT_NUM + 2 * REL_NUM) * EMB_DIM,
            transcendentals=64,
            bytes_accessed=8 * 1024),
    )(all_idx, entity_emb, relation_emb, relation_hyper)
    return out[0, 0]


def transh_forward_ref(pos_x, neg_x, entity_emb, relation_emb, relation_hyper):
    """Plain-JAX reference mirroring the PyTorch module."""
    def score(triples):
        h = entity_emb[triples[:, 0]]
        w = relation_hyper[triples[:, 1]]
        r = relation_emb[triples[:, 1]]
        t = entity_emb[triples[:, 2]]
        h = h - w * jnp.sum(h * w, axis=1, keepdims=True)
        t = t - w * jnp.sum(t * w, axis=1, keepdims=True)
        d = h + r - t + PD_EPS
        if L_NORM == 1:
            return jnp.sum(jnp.abs(d), axis=1)
        return jnp.sqrt(jnp.sum(d * d, axis=1))

    pos_s, neg_s = score(pos_x), score(neg_x)
    margin_loss = jnp.sum(jnp.maximum(pos_s - neg_s + MARGIN, 0.0))
    ent_loss = jnp.sum(jnp.maximum(
        jnp.sqrt(jnp.sum(entity_emb ** 2, axis=1)) - 1.0, 0.0))
    orth_loss = jnp.sum(jnp.maximum(
        jnp.sum(relation_hyper * relation_emb, axis=1)
        / jnp.sqrt(jnp.sum(relation_emb ** 2, axis=1)) - EPS ** 2, 0.0))
    return (margin_loss / pos_x.shape[0]
            + C_REG * (ent_loss / ENT_NUM + orth_loss / REL_NUM))


if __name__ == "__main__":
    key = jax.random.PRNGKey(0)
    k1, k2, k3, k4, k5 = jax.random.split(key, 5)

    # deterministic parameter init (nn.Embedding default: N(0, 1))
    entity_emb = jax.random.normal(k1, (ENT_NUM, EMB_DIM), dtype=jnp.float32)
    relation_emb = jax.random.normal(k2, (REL_NUM, EMB_DIM), dtype=jnp.float32)
    relation_hyper = jax.random.normal(k3, (REL_NUM, EMB_DIM), dtype=jnp.float32)

    # triples: (head, relation, tail) integer indices
    pos_heads = jax.random.randint(k4, (BATCH, 1), 0, ENT_NUM, dtype=jnp.int32)
    pos_rels = jax.random.randint(k4, (BATCH, 1), 0, REL_NUM, dtype=jnp.int32)
    pos_tails = jax.random.randint(k5, (BATCH, 1), 0, ENT_NUM, dtype=jnp.int32)
    pos_x = jnp.concatenate([pos_heads, pos_rels, pos_tails], axis=1)

    neg_heads = jax.random.randint(k5, (BATCH, 1), 0, ENT_NUM, dtype=jnp.int32)
    neg_rels = pos_rels
    neg_tails = jax.random.randint(k4, (BATCH, 1), 0, ENT_NUM, dtype=jnp.int32)
    neg_x = jnp.concatenate([neg_heads, neg_rels, neg_tails], axis=1)

    loss = transh_forward(pos_x, neg_x, entity_emb, relation_emb, relation_hyper)
    loss = jax.block_until_ready(loss)

    loss_ref = transh_forward_ref(pos_x, neg_x, entity_emb, relation_emb,
                                  relation_hyper)
    assert jnp.allclose(loss, loss_ref, rtol=1e-5, atol=1e-5), (loss, loss_ref)

    print("KERNEL_OK")
</pallas_src>

<mosaic_0001>
module attributes {stable_mosaic.version = 11 : i64} {
  func.func @_transh_loss_kernel(%arg0: memref<64x1xi32, #tpu.memory_space<vmem>>, %arg1: memref<16x32xf32, #tpu.memory_space<vmem>>, %arg2: memref<8x32xf32, #tpu.memory_space<vmem>>, %arg3: memref<8x32xf32, #tpu.memory_space<vmem>>, %arg4: memref<1x1xf32, #tpu.memory_space<smem>>) attributes {dimension_semantics = [], scalar_prefetch = 0 : i64, scratch_operands = 0 : i64, tpu.core_type = #tpu.core_type<tc>} {
    %c0 = arith.constant 0 : index
    %c0_0 = arith.constant 0 : index
    %0 = vector.load %arg1[%c0, %c0_0] : memref<16x32xf32, #tpu.memory_space<vmem>>, vector<16x32xf32>
    %c0_1 = arith.constant 0 : index
    %c0_2 = arith.constant 0 : index
    %1 = vector.load %arg2[%c0_1, %c0_2] : memref<8x32xf32, #tpu.memory_space<vmem>>, vector<8x32xf32>
    %c0_3 = arith.constant 0 : index
    %c0_4 = arith.constant 0 : index
    %2 = vector.load %arg3[%c0_3, %c0_4] : memref<8x32xf32, #tpu.memory_space<vmem>>, vector<8x32xf32>
    %c0_5 = arith.constant 0 : index
    %c0_6 = arith.constant 0 : index
    %3 = vector.load %arg0[%c0_5, %c0_6] : memref<64x1xi32, #tpu.memory_space<vmem>>, vector<64x1xi32>
    %4 = tpu.concatenate %0, %1, %2 in 0 : vector<16x32xf32>, vector<8x32xf32>, vector<8x32xf32> -> vector<32x32xf32>
    %5 = tpu.iota {dimensions = array<i32: 1>} : vector<64x32xi32>
    %6 = vector.broadcast %3 : vector<64x1xi32> to vector<64x32xi32>
    %7 = arith.cmpi eq, %5, %6 : vector<64x32xi32>
    %8 = arith.extui %7 : vector<64x32xi1> to vector<64x32xi32>
    %9 = arith.sitofp %8 : vector<64x32xi32> to vector<64x32xf32>
    %cst = arith.constant dense<0.000000e+00> : vector<64x32xf32>
    %10 = tpu.matmul %9, %4, %cst {dimension_numbers = #tpu.dot_dimension_numbers<[1], [0], [0], [1], [0, 0, 1, 1], [], []>, precision = #tpu.contract_precision<fp32>} : vector<64x32xf32>, vector<32x32xf32>, vector<64x32xf32> -> vector<64x32xf32>
    %11 = vector.extract_strided_slice %10 {offsets = [0, 0], sizes = [32, 32], strides = [1, 1]} : vector<64x32xf32> to vector<32x32xf32>
    %12 = vector.extract_strided_slice %10 {offsets = [32, 0], sizes = [16, 32], strides = [1, 1]} : vector<64x32xf32> to vector<16x32xf32>
    %13 = vector.extract_strided_slice %10 {offsets = [48, 0], sizes = [16, 32], strides = [1, 1]} : vector<64x32xf32> to vector<16x32xf32>
    %14 = tpu.concatenate %13, %13 in 0 : vector<16x32xf32>, vector<16x32xf32> -> vector<32x32xf32>
    %15 = arith.mulf %11, %14 : vector<32x32xf32>
    %cst_7 = arith.constant dense<0.000000e+00> : vector<32xf32>
    %16 = vector.multi_reduction <add>, %15, %cst_7 [1] : vector<32x32xf32> to vector<32xf32>
    %17 = vector.shape_cast %16 : vector<32xf32> to vector<32x1xf32>
    %18 = vector.broadcast %17 : vector<32x1xf32> to vector<32x32xf32>
    %19 = arith.mulf %14, %18 : vector<32x32xf32>
    %20 = arith.subf %11, %19 : vector<32x32xf32>
    %21 = vector.extract_strided_slice %20 {offsets = [0, 0], sizes = [16, 32], strides = [1, 1]} : vector<32x32xf32> to vector<16x32xf32>
    %22 = arith.addf %21, %12 : vector<16x32xf32>
    %23 = vector.extract_strided_slice %20 {offsets = [16, 0], sizes = [16, 32], strides = [1, 1]} : vector<32x32xf32> to vector<16x32xf32>
    %24 = arith.subf %22, %23 : vector<16x32xf32>
    %cst_8 = arith.constant 9.99999997E-7 : f32
    %25 = vector.broadcast %cst_8 : f32 to vector<16x32xf32>
    %26 = arith.addf %24, %25 : vector<16x32xf32>
    %27 = arith.mulf %26, %26 : vector<16x32xf32>
    %cst_9 = arith.constant dense<0.000000e+00> : vector<16xf32>
    %28 = vector.multi_reduction <add>, %27, %cst_9 [1] : vector<16x32xf32> to vector<16xf32>
    %29 = vector.shape_cast %28 : vector<16xf32> to vector<16x1xf32>
    %30 = math.sqrt %29 : vector<16x1xf32>
    %31 = vector.extract_strided_slice %30 {offsets = [0, 0], sizes = [8, 1], strides = [1, 1]} : vector<16x1xf32> to vector<8x1xf32>
    %32 = vector.extract_strided_slice %30 {offsets = [8, 0], sizes = [8, 1], strides = [1, 1]} : vector<16x1xf32> to vector<8x1xf32>
    %33 = arith.subf %31, %32 : vector<8x1xf32>
    %cst_10 = arith.constant 1.000000e+00 : f32
    %34 = vector.broadcast %cst_10 : f32 to vector<8x1xf32>
    %35 = arith.addf %33, %34 : vector<8x1xf32>
    %cst_11 = arith.constant 0.000000e+00 : f32
    %36 = vector.broadcast %cst_11 : f32 to vector<8x1xf32>
    %37 = arith.maximumf %35, %36 : vector<8x1xf32>
    %38 = arith.mulf %0, %0 : vector<16x32xf32>
    %39 = arith.mulf %1, %2 : vector<8x32xf32>
    %40 = arith.mulf %1, %1 : vector<8x32xf32>
    %41 = tpu.concatenate %38, %39, %40 in 0 : vector<16x32xf32>, vector<8x32xf32>, vector<8x32xf32> -> vector<32x32xf32>
    %cst_12 = arith.constant dense<0.000000e+00> : vector<32xf32>
    %42 = vector.multi_reduction <add>, %41, %cst_12 [1] : vector<32x32xf32> to vector<32xf32>
    %43 = vector.shape_cast %42 : vector<32xf32> to vector<32x1xf32>
    %44 = vector.extract_strided_slice %43 {offsets = [0, 0], sizes = [16, 1], strides = [1, 1]} : vector<32x1xf32> to vector<16x1xf32>
    %45 = vector.extract_strided_slice %43 {offsets = [16, 0], sizes = [8, 1], strides = [1, 1]} : vector<32x1xf32> to vector<8x1xf32>
    %46 = vector.extract_strided_slice %43 {offsets = [24, 0], sizes = [8, 1], strides = [1, 1]} : vector<32x1xf32> to vector<8x1xf32>
    %47 = math.sqrt %44 : vector<16x1xf32>
    %cst_13 = arith.constant 1.000000e+00 : f32
    %48 = vector.broadcast %cst_13 : f32 to vector<16x1xf32>
    %49 = arith.subf %47, %48 : vector<16x1xf32>
    %cst_14 = arith.constant 0.000000e+00 : f32
    %50 = vector.broadcast %cst_14 : f32 to vector<16x1xf32>
    %51 = arith.maximumf %49, %50 : vector<16x1xf32>
    %52 = math.rsqrt %46 : vector<8x1xf32>
    %53 = arith.mulf %45, %52 : vector<8x1xf32>
    %cst_15 = arith.constant 9.99999997E-7 : f32
    %54 = vector.broadcast %cst_15 : f32 to vector<8x1xf32>
    %55 = arith.subf %53, %54 : vector<8x1xf32>
    %cst_16 = arith.constant 0.000000e+00 : f32
    %56 = vector.broadcast %cst_16 : f32 to vector<8x1xf32>
    %57 = arith.maximumf %55, %56 : vector<8x1xf32>
    %cst_17 = arith.constant 1.250000e-01 : f32
    %58 = vector.broadcast %cst_17 : f32 to vector<8x1xf32>
    %59 = arith.mulf %37, %58 : vector<8x1xf32>
    %cst_18 = arith.constant 6.250000e-02 : f32
    %60 = vector.broadcast %cst_18 : f32 to vector<16x1xf32>
    %61 = arith.mulf %51, %60 : vector<16x1xf32>
    %cst_19 = arith.constant 1.250000e-01 : f32
    %62 = vector.broadcast %cst_19 : f32 to vector<8x1xf32>
    %63 = arith.mulf %57, %62 : vector<8x1xf32>
    %64 = tpu.concatenate %59, %61, %63 in 0 : vector<8x1xf32>, vector<16x1xf32>, vector<8x1xf32> -> vector<32x1xf32>
    %65 = vector.shape_cast %64 : vector<32x1xf32> to vector<1x32x1xf32>
    %cst_20 = arith.constant dense<0.000000e+00> : vector<1xf32>
    %66 = vector.multi_reduction <add>, %65, %cst_20 [1, 2] : vector<1x32x1xf32> to vector<1xf32>
    %67 = vector.shape_cast %66 : vector<1xf32> to vector<1x1x1xf32>
    %68 = vector.extract %67[0, 0, 0] : f32 from vector<1x1x1xf32>
    %c0_21 = arith.constant 0 : index
    %c0_22 = arith.constant 0 : index
    %69 = memref.load %arg4[%c0_21, %c0_22] : memref<1x1xf32, #tpu.memory_space<smem>>
    memref.store %68, %arg4[%c0_21, %c0_22] : memref<1x1xf32, #tpu.memory_space<smem>>
    return
  }
}

</mosaic_0001>

<llo_original>
// kernel: tpu_custom_call.1
$region0: #{tpu_custom_call.1}
  #allocation0 [shape = 'u32[]', space=smem, size = 0x4, offset = 0x4, fixed_abs, tag = 'smem constant byte address 0x4 - core index']
  #allocation1 [shape = 'u32[144,128]{1,0:T(1,128)}', space=vmem, size = 0x12000, scoped, tag = 'internal scratch']
  %s0 = inlined_call_operand.vmem [shape: s32[64,1], index: 0, kind: input, shape index: {}]
  %s1 = inlined_call_operand.vmem [shape: f32[16,32], index: 1, kind: input, shape index: {}]
  %s2 = inlined_call_operand.vmem [shape: f32[8,32], index: 2, kind: input, shape index: {}]
  %s3 = inlined_call_operand.vmem [shape: f32[8,32], index: 3, kind: input, shape index: {}]
  %s4 = inlined_call_operand.hbm [shape: f32[1,1], index: 4, kind: output, shape index: {}]
  %s5 = sld [smem:[#allocation0]]
  $region26: #{tpu_custom_call.1} parent=0
    _
  %s7 = ssub.s32 1, %s5
  %s8 = scalar_select 0, %s7, %s5
  $region1: #{tpu_custom_call.1} parent=0
    #allocation2 [shape = 'u8[512]{0}', space=smem, size = 0x200, scoped, tag = 'output window, operand 0, single buffered']
    #allocation3 [shape = 's32[1]{0}', space=sflag, size = 0x4, scoped, tag = 'scoped memory for tpu_custom_call.1']
    %9 = vsyncpa [#allocation3], 0
    // Predicated region
    $region2: #{tpu_custom_call.1} parent=1 // pred_check
      _
    $region3: #{tpu_custom_call.1} parent=1 // pred_check_branch
      %11 = sbr.rel (0) target = $region5
    $region4: #{tpu_custom_call.1} parent=1 // pred_region
      _
    $region5: #{tpu_custom_call.1} parent=1 // pred_fallthru
      _
    // Predicated region
    $region6: #{tpu_custom_call.1} parent=1 // pred_check
      _
    $region7: #{tpu_custom_call.1} parent=1 // pred_check_branch
      %13 = sbr.rel (0) target = $region9
    $region8: #{tpu_custom_call.1} parent=1 // pred_region
      _
    $region9: #{tpu_custom_call.1} parent=1 // pred_fallthru
      _
    // Predicated region
    $region10: #{tpu_custom_call.1} parent=1 // pred_check
      _
    $region11: #{tpu_custom_call.1} parent=1 // pred_check_branch
      %15 = sbr.rel (0) target = $region13
    $region12: #{tpu_custom_call.1} parent=1 // pred_region
      _
    $region13: #{tpu_custom_call.1} parent=1 // pred_fallthru
      _
    // Predicated region
    $region14: #{tpu_custom_call.1} parent=1 // pred_check
      _
    $region15: #{tpu_custom_call.1} parent=1 // pred_check_branch
      %17 = sbr.rel (0) target = $region17
    $region16: #{tpu_custom_call.1} parent=1 // pred_region
      _
    $region17: #{tpu_custom_call.1} parent=1 // pred_fallthru
      _
    %v18 = vld [vmem:[%s1] sm:$0xff]
    %v19 = vld [vmem:[%s1 + $0x8] sm:$0xff]
    %v20 = vld [vmem:[%s2] sm:$0xff]
    %v21 = vld [vmem:[%s3] sm:$0xff]
    %v22 = vld [vmem:[%s0] sm:$0xff]
    %v23 = vld [vmem:[%s0 + $0x8] sm:$0xff]
    %v24 = vld [vmem:[%s0 + $0x10] sm:$0xff]
    %v25 = vld [vmem:[%s0 + $0x18] sm:$0xff]
    %v26 = vld [vmem:[%s0 + $0x20] sm:$0xff]
    %v27 = vld [vmem:[%s0 + $0x28] sm:$0xff]
    %v28 = vld [vmem:[%s0 + $0x30] sm:$0xff]
    %v29 = vld [vmem:[%s0 + $0x38] sm:$0xff]
    %v30 = vlaneseq
    %v31 = vand.u32 %v30, 127
    %32 = vset.pattern.permute.xlu0 0
    %33 = vperm.xlu0 %32, %v22
    %v34 = vpop.permute.xlu0 %33
    %35 = vset.pattern.permute.xlu0 0
    %36 = vperm.xlu0 %35, %v23
    %v37 = vpop.permute.xlu0 %36
    %38 = vset.pattern.permute.xlu0 0
    %39 = vperm.xlu0 %38, %v24
    %v40 = vpop.permute.xlu0 %39
    %41 = vset.pattern.permute.xlu0 0
    %42 = vperm.xlu0 %41, %v25
    %v43 = vpop.permute.xlu0 %42
    %44 = vset.pattern.permute.xlu0 0
    %45 = vperm.xlu0 %44, %v26
    %v46 = vpop.permute.xlu0 %45
    %47 = vset.pattern.permute.xlu0 0
    %48 = vperm.xlu0 %47, %v27
    %v49 = vpop.permute.xlu0 %48
    %50 = vset.pattern.permute.xlu0 0
    %51 = vperm.xlu0 %50, %v28
    %v52 = vpop.permute.xlu0 %51
    %53 = vset.pattern.permute.xlu0 0
    %54 = vperm.xlu0 %53, %v29
    %v55 = vpop.permute.xlu0 %54
    %vm56 = vcmp.eq.s32.totalorder %v31, %v34
    %vm57 = vcmp.eq.s32.totalorder %v31, %v37
    %vm58 = vcmp.eq.s32.totalorder %v31, %v40
    %vm59 = vcmp.eq.s32.totalorder %v31, %v43
    %vm60 = vcmp.eq.s32.totalorder %v31, %v46
    %vm61 = vcmp.eq.s32.totalorder %v31, %v49
    %vm62 = vcmp.eq.s32.totalorder %v31, %v52
    %vm63 = vcmp.eq.s32.totalorder %v31, %v55
    %v64 = vsel %vm56, 1, 0
    %v65 = vsel %vm57, 1, 0
    %v66 = vsel %vm58, 1, 0
    %v67 = vsel %vm59, 1, 0
    %v68 = vsel %vm60, 1, 0
    %v69 = vsel %vm61, 1, 0
    %v70 = vsel %vm62, 1, 0
    %v71 = vsel %vm63, 1, 0
    %v72 = vcvt.s32.f32 %v64
    %v73 = vcvt.s32.f32 %v65
    %v74 = vcvt.s32.f32 %v66
    %v75 = vcvt.s32.f32 %v67
    %v76 = vcvt.s32.f32 %v68
    %v77 = vcvt.s32.f32 %v69
    %v78 = vcvt.s32.f32 %v70
    %v79 = vcvt.s32.f32 %v71
    %vm80 = vcmask 261120
    %v82 = vsel %vm80, %v72, 0
    %v85 = vsel %vm80, %v73, 0
    %v88 = vsel %vm80, %v74, 0
    %v91 = vsel %vm80, %v75, 0
    %v94 = vsel %vm80, %v76, 0
    %v97 = vsel %vm80, %v77, 0
    %v100 = vsel %vm80, %v78, 0
    %v103 = vsel %vm80, %v79, 0
    %105 = vmatprep.subr.mxu0 0.0
    %106 = vmatpush1.msra.mxu0 0.0
    %107 = vmatprep.subr.mxu0 0.0
    %108 = vmatpush1.msra.mxu0 0.0
    %109 = vmatprep.subr.mxu0 0.0
    %110 = vmatpush1.msra.mxu0 0.0
    %111 = vmatprep.subr.mxu0 0.0
    %112 = vmatpush1.msra.mxu0 0.0
    %113 = vmatprep.subr.mxu0 0.0
    %114 = vmatpush1.msra.mxu0 0.0
    %115 = vmatprep.subr.mxu0 0.0
    %116 = vmatpush1.msra.mxu0 0.0
    %117 = vmatprep.subr.mxu0 0.0
    %118 = vmatpush1.msra.mxu0 0.0
    %119 = vmatprep.subr.mxu0 0.0
    %120 = vmatpush1.msra.mxu0 0.0
    %121 = vmatprep.subr.mxu0 0.0
    %122 = vmatpush1.msra.mxu0 0.0
    %123 = vmatprep.subr.mxu0 0.0
    %124 = vmatpush1.msra.mxu0 0.0
    %125 = vmatprep.subr.mxu0 0.0
    %126 = vmatpush1.msra.mxu0 0.0
    %127 = vmatprep.subr.mxu0 0.0
    %128 = vmatpush1.msra.mxu0 0.0
    %129 = vmatprep.subr.mxu0 0.0
    %v130 = vand.u32 %v21, 4294901760
    %131 = vmatpush1.msra.mxu0 %v130
    %132 = vmatprep.subr.mxu0 0.0
    %v133 = vand.u32 %v20, 4294901760
    %134 = vmatpush1.msra.mxu0 %v133
    %135 = vmatprep.subr.mxu0 0.0
    %v136 = vand.u32 %v19, 4294901760
    %137 = vmatpush1.msra.mxu0 %v136
    %138 = vmatprep.subr.mxu0 0.0
    %v139 = vand.u32 %v18, 4294901760
    %140 = vmatpush1.msra.mxu0 %v139
    %141 = vmatprep.subr.mxu0 0.0
    %142 = vmatpush2.msra.mxu0 0.0
    %143 = vmatprep.subr.mxu0 0.0
    %144 = vmatpush2.msra.mxu0 0.0
    %145 = vmatprep.subr.mxu0 0.0
    %146 = vmatpush2.msra.mxu0 0.0
    %147 = vmatprep.subr.mxu0 0.0
    %148 = vmatpush2.msra.mxu0 0.0
    %149 = vmatprep.subr.mxu0 0.0
    %150 = vmatpush2.msra.mxu0 0.0
    %151 = vmatprep.subr.mxu0 0.0
    %152 = vmatpush2.msra.mxu0 0.0
    %153 = vmatprep.subr.mxu0 0.0
    %154 = vmatpush2.msra.mxu0 0.0
    %155 = vmatprep.subr.mxu0 0.0
    %156 = vmatpush2.msra.mxu0 0.0
    %157 = vmatprep.subr.mxu0 0.0
    %158 = vmatpush2.msra.mxu0 0.0
    %159 = vmatprep.subr.mxu0 0.0
    %160 = vmatpush2.msra.mxu0 0.0
    %161 = vmatprep.subr.mxu0 0.0
    %162 = vmatpush2.msra.mxu0 0.0
    %163 = vmatprep.subr.mxu0 0.0
    %164 = vmatpush2.msra.mxu0 0.0
    %165 = vmatprep.subr.mxu0 0.0
    %166 = vmatpush2.msra.mxu0 0.0
    %167 = vmatprep.subr.mxu0 0.0
    %168 = vmatpush2.msra.mxu0 0.0
    %169 = vmatprep.subr.mxu0 0.0
    %170 = vmatpush2.msra.mxu0 0.0
    %171 = vmatprep.subr.mxu0 0.0
    %172 = vmatpush2.msra.mxu0 0.0
    %173 = vmatprep.mubr.f32.mxu0 0.0
    %v174 = vand.u32 %v82, 4294901760
    %v175 = vsub.f32 %v82, %v174
    %v176 = vand.u32 %v175, 4294901760
    %v177 = vsub.f32 %v175, %v176
    %v178 = vand.u32 %v177, 4294901760
    %179 = vmatmul.mubr.f32.gmra.mxu0 %v178
    %v180 = vpop.f32.mrf.mxu0
    %v181 = vadd.f32 0.0, %v180
    %v182 = vpop.f32.mrf.mxu0
    %183 = vmatprep.mubr.f32.mxu0 0.0
    %v184 = vand.u32 %v85, 4294901760
    %v185 = vsub.f32 %v85, %v184
    %v186 = vand.u32 %v185, 4294901760
    %v187 = vsub.f32 %v185, %v186
    %v188 = vand.u32 %v187, 4294901760
    %189 = vmatmul.mubr.f32.gmra.mxu0 %v188
    %v190 = vpop.f32.mrf.mxu0
    %v191 = vadd.f32 0.0, %v190
    %v192 = vpop.f32.mrf.mxu0
    %193 = vmatprep.mubr.f32.mxu0 0.0
    %v194 = vand.u32 %v88, 4294901760
    %v195 = vsub.f32 %v88, %v194
    %v196 = vand.u32 %v195, 4294901760
    %v197 = vsub.f32 %v195, %v196
    %v198 = vand.u32 %v197, 4294901760
    %199 = vmatmul.mubr.f32.gmra.mxu0 %v198
    %v200 = vpop.f32.mrf.mxu0
    %v201 = vadd.f32 0.0, %v200
    %v202 = vpop.f32.mrf.mxu0
    %203 = vmatprep.mubr.f32.mxu0 0.0
    %v204 = vand.u32 %v91, 4294901760
    %v205 = vsub.f32 %v91, %v204
    %v206 = vand.u32 %v205, 4294901760
    %v207 = vsub.f32 %v205, %v206
    %v208 = vand.u32 %v207, 4294901760
    %209 = vmatmul.mubr.f32.gmra.mxu0 %v208
    %v210 = vpop.f32.mrf.mxu0
    %v211 = vadd.f32 0.0, %v210
    %v212 = vpop.f32.mrf.mxu0
    %213 = vmatprep.mubr.f32.mxu0 0.0
    %v214 = vand.u32 %v94, 4294901760
    %v215 = vsub.f32 %v94, %v214
    %v216 = vand.u32 %v215, 4294901760
    %v217 = vsub.f32 %v215, %v216
    %v218 = vand.u32 %v217, 4294901760
    %219 = vmatmul.mubr.f32.gmra.mxu0 %v218
    %v220 = vpop.f32.mrf.mxu0
    %v221 = vadd.f32 0.0, %v220
    %v222 = vpop.f32.mrf.mxu0
    %223 = vmatprep.mubr.f32.mxu0 0.0
    %v224 = vand.u32 %v97, 4294901760
    %v225 = vsub.f32 %v97, %v224
    %v226 = vand.u32 %v225, 4294901760
    %v227 = vsub.f32 %v225, %v226
    %v228 = vand.u32 %v227, 4294901760
    %229 = vmatmul.mubr.f32.gmra.mxu0 %v228
    %v230 = vpop.f32.mrf.mxu0
    %v231 = vadd.f32 0.0, %v230
    %v232 = vpop.f32.mrf.mxu0
    %233 = vmatprep.mubr.f32.mxu0 0.0
    %v234 = vand.u32 %v100, 4294901760
    %v235 = vsub.f32 %v100, %v234
    %v236 = vand.u32 %v235, 4294901760
    %v237 = vsub.f32 %v235, %v236
    %v238 = vand.u32 %v237, 4294901760
    %239 = vmatmul.mubr.f32.gmra.mxu0 %v238
    %v240 = vpop.f32.mrf.mxu0
    %v241 = vadd.f32 0.0, %v240
    %v242 = vpop.f32.mrf.mxu0
    %243 = vmatprep.mubr.f32.mxu0 0.0
    %v244 = vand.u32 %v103, 4294901760
    %v245 = vsub.f32 %v103, %v244
    %v246 = vand.u32 %v245, 4294901760
    %v247 = vsub.f32 %v245, %v246
    %v248 = vand.u32 %v247, 4294901760
    %249 = vmatmul.mubr.f32.gmra.mxu0 %v248
    %v250 = vpop.f32.mrf.mxu0
    %v251 = vadd.f32 0.0, %v250
    %v252 = vpop.f32.mrf.mxu0
    %253 = vdwg.mxu0
    %254 = vmatprep.subr.mxu0 0.0
    %255 = vmatpush1.msra.mxu0 0.0
    %256 = vmatprep.subr.mxu0 0.0
    %257 = vmatpush1.msra.mxu0 0.0
    %258 = vmatprep.subr.mxu0 0.0
    %259 = vmatpush1.msra.mxu0 0.0
    %260 = vmatprep.subr.mxu0 0.0
    %261 = vmatpush1.msra.mxu0 0.0
    %262 = vmatprep.subr.mxu0 0.0
    %263 = vmatpush1.msra.mxu0 0.0
    %264 = vmatprep.subr.mxu0 0.0
    %265 = vmatpush1.msra.mxu0 0.0
    %266 = vmatprep.subr.mxu0 0.0
    %267 = vmatpush1.msra.mxu0 0.0
    %268 = vmatprep.subr.mxu0 0.0
    %269 = vmatpush1.msra.mxu0 0.0
    %270 = vmatprep.subr.mxu0 0.0
    %271 = vmatpush1.msra.mxu0 0.0
    %272 = vmatprep.subr.mxu0 0.0
    %273 = vmatpush1.msra.mxu0 0.0
    %274 = vmatprep.subr.mxu0 0.0
    %275 = vmatpush1.msra.mxu0 0.0
    %276 = vmatprep.subr.mxu0 0.0
    %277 = vmatpush1.msra.mxu0 0.0
    %278 = vmatprep.subr.mxu0 0.0
    %v279 = vand.u32 %v21, 4294901760
    %v280 = vsub.f32 %v21, %v279
    %v281 = vand.u32 %v280, 4294901760
    %v282 = vsub.f32 %v280, %v281
    %v283 = vand.u32 %v282, 4294901760
    %284 = vmatpush1.msra.mxu0 %v283
    %285 = vmatprep.subr.mxu0 0.0
    %v286 = vand.u32 %v20, 4294901760
    %v287 = vsub.f32 %v20, %v286
    %v288 = vand.u32 %v287, 4294901760
    %v289 = vsub.f32 %v287, %v288
    %v290 = vand.u32 %v289, 4294901760
    %291 = vmatpush1.msra.mxu0 %v290
    %292 = vmatprep.subr.mxu0 0.0
    %v293 = vand.u32 %v19, 4294901760
    %v294 = vsub.f32 %v19, %v293
    %v295 = vand.u32 %v294, 4294901760
    %v296 = vsub.f32 %v294, %v295
    %v297 = vand.u32 %v296, 4294901760
    %298 = vmatpush1.msra.mxu0 %v297
    %299 = vmatprep.subr.mxu0 0.0
    %v300 = vand.u32 %v18, 4294901760
    %v301 = vsub.f32 %v18, %v300
    %v302 = vand.u32 %v301, 4294901760
    %v303 = vsub.f32 %v301, %v302
    %v304 = vand.u32 %v303, 4294901760
    %305 = vmatpush1.msra.mxu0 %v304
    %306 = vmatprep.subr.mxu0 0.0
    %307 = vmatpush2.msra.mxu0 0.0
    %308 = vmatprep.subr.mxu0 0.0
    %309 = vmatpush2.msra.mxu0 0.0
    %310 = vmatprep.subr.mxu0 0.0
    %311 = vmatpush2.msra.mxu0 0.0
    %312 = vmatprep.subr.mxu0 0.0
    %313 = vmatpush2.msra.mxu0 0.0
    %314 = vmatprep.subr.mxu0 0.0
    %315 = vmatpush2.msra.mxu0 0.0
    %316 = vmatprep.subr.mxu0 0.0
    %317 = vmatpush2.msra.mxu0 0.0
    %318 = vmatprep.subr.mxu0 0.0
    %319 = vmatpush2.msra.mxu0 0.0
    %320 = vmatprep.subr.mxu0 0.0
    %321 = vmatpush2.msra.mxu0 0.0
    %322 = vmatprep.subr.mxu0 0.0
    %323 = vmatpush2.msra.mxu0 0.0
    %324 = vmatprep.subr.mxu0 0.0
    %325 = vmatpush2.msra.mxu0 0.0
    %326 = vmatprep.subr.mxu0 0.0
    %327 = vmatpush2.msra.mxu0 0.0
    %328 = vmatprep.subr.mxu0 0.0
    %329 = vmatpush2.msra.mxu0 0.0
    %330 = vmatprep.subr.mxu0 0.0
    %331 = vmatpush2.msra.mxu0 0.0
    %332 = vmatprep.subr.mxu0 0.0
    %333 = vmatpush2.msra.mxu0 0.0
    %334 = vmatprep.subr.mxu0 0.0
    %335 = vmatpush2.msra.mxu0 0.0
    %336 = vmatprep.subr.mxu0 0.0
    %337 = vmatpush2.msra.mxu0 0.0
    %338 = vmatprep.mubr.f32.mxu0 0.0
    %v339 = vand.u32 %v82, 4294901760
    %340 = vmatmul.mubr.f32.gmra.mxu0 %v339
    %v341 = vpop.f32.mrf.mxu0
    %v342 = vadd.f32 %v181, %v341
    %v343 = vpop.f32.mrf.mxu0
    %344 = vmatprep.mubr.f32.mxu0 0.0
    %v345 = vand.u32 %v85, 4294901760
    %346 = vmatmul.mubr.f32.gmra.mxu0 %v345
    %v347 = vpop.f32.mrf.mxu0
    %v348 = vadd.f32 %v191, %v347
    %v349 = vpop.f32.mrf.mxu0
    %350 = vmatprep.mubr.f32.mxu0 0.0
    %v351 = vand.u32 %v88, 4294901760
    %352 = vmatmul.mubr.f32.gmra.mxu0 %v351
    %v353 = vpop.f32.mrf.mxu0
    %v354 = vadd.f32 %v201, %v353
    %v355 = vpop.f32.mrf.mxu0
    %356 = vmatprep.mubr.f32.mxu0 0.0
    %v357 = vand.u32 %v91, 4294901760
    %358 = vmatmul.mubr.f32.gmra.mxu0 %v357
    %v359 = vpop.f32.mrf.mxu0
    %v360 = vadd.f32 %v211, %v359
    %v361 = vpop.f32.mrf.mxu0
    %362 = vmatprep.mubr.f32.mxu0 0.0
    %v363 = vand.u32 %v94, 4294901760
    %364 = vmatmul.mubr.f32.gmra.mxu0 %v363
    %v365 = vpop.f32.mrf.mxu0
    %v366 = vadd.f32 %v221, %v365
    %v367 = vpop.f32.mrf.mxu0
    %368 = vmatprep.mubr.f32.mxu0 0.0
    %v369 = vand.u32 %v97, 4294901760
    %370 = vmatmul.mubr.f32.gmra.mxu0 %v369
    %v371 = vpop.f32.mrf.mxu0
    %v372 = vadd.f32 %v231, %v371
    %v373 = vpop.f32.mrf.mxu0
    %374 = vmatprep.mubr.f32.mxu0 0.0
    %v375 = vand.u32 %v100, 4294901760
    %376 = vmatmul.mubr.f32.gmra.mxu0 %v375
    %v377 = vpop.f32.mrf.mxu0
    %v378 = vadd.f32 %v241, %v377
    %v379 = vpop.f32.mrf.mxu0
    %380 = vmatprep.mubr.f32.mxu0 0.0
    %v381 = vand.u32 %v103, 4294901760
    %382 = vmatmul.mubr.f32.gmra.mxu0 %v381
    %v383 = vpop.f32.mrf.mxu0
    %v384 = vadd.f32 %v251, %v383
    %v385 = vpop.f32.mrf.mxu0
    %386 = vdwg.mxu0
    %387 = vmatprep.subr.mxu0 0.0
    %388 = vmatpush1.msra.mxu0 0.0
    %389 = vmatprep.subr.mxu0 0.0
    %390 = vmatpush1.msra.mxu0 0.0
    %391 = vmatprep.subr.mxu0 0.0
    %392 = vmatpush1.msra.mxu0 0.0
    %393 = vmatprep.subr.mxu0 0.0
    %394 = vmatpush1.msra.mxu0 0.0
    %395 = vmatprep.subr.mxu0 0.0
    %396 = vmatpush1.msra.mxu0 0.0
    %397 = vmatprep.subr.mxu0 0.0
    %398 = vmatpush1.msra.mxu0 0.0
    %399 = vmatprep.subr.mxu0 0.0
    %400 = vmatpush1.msra.mxu0 0.0
    %401 = vmatprep.subr.mxu0 0.0
    %402 = vmatpush1.msra.mxu0 0.0
    %403 = vmatprep.subr.mxu0 0.0
    %404 = vmatpush1.msra.mxu0 0.0
    %405 = vmatprep.subr.mxu0 0.0
    %406 = vmatpush1.msra.mxu0 0.0
    %407 = vmatprep.subr.mxu0 0.0
    %408 = vmatpush1.msra.mxu0 0.0
    %409 = vmatprep.subr.mxu0 0.0
    %410 = vmatpush1.msra.mxu0 0.0
    %411 = vmatprep.subr.mxu0 0.0
    %v412 = vand.u32 %v21, 4294901760
    %v413 = vsub.f32 %v21, %v412
    %414 = vmatpush1.msra.mxu0 %v413
    %415 = vmatprep.subr.mxu0 0.0
    %v416 = vand.u32 %v20, 4294901760
    %v417 = vsub.f32 %v20, %v416
    %418 = vmatpush1.msra.mxu0 %v417
    %419 = vmatprep.subr.mxu0 0.0
    %v420 = vand.u32 %v19, 4294901760
    %v421 = vsub.f32 %v19, %v420
    %422 = vmatpush1.msra.mxu0 %v421
    %423 = vmatprep.subr.mxu0 0.0
    %v424 = vand.u32 %v18, 4294901760
    %v425 = vsub.f32 %v18, %v424
    %426 = vmatpush1.msra.mxu0 %v425
    %427 = vmatprep.subr.mxu0 0.0
    %428 = vmatpush2.msra.mxu0 0.0
    %429 = vmatprep.subr.mxu0 0.0
    %430 = vmatpush2.msra.mxu0 0.0
    %431 = vmatprep.subr.mxu0 0.0
    %432 = vmatpush2.msra.mxu0 0.0
    %433 = vmatprep.subr.mxu0 0.0
    %434 = vmatpush2.msra.mxu0 0.0
    %435 = vmatprep.subr.mxu0 0.0
    %436 = vmatpush2.msra.mxu0 0.0
    %437 = vmatprep.subr.mxu0 0.0
    %438 = vmatpush2.msra.mxu0 0.0
    %439 = vmatprep.subr.mxu0 0.0
    %440 = vmatpush2.msra.mxu0 0.0
    %441 = vmatprep.subr.mxu0 0.0
    %442 = vmatpush2.msra.mxu0 0.0
    %443 = vmatprep.subr.mxu0 0.0
    %444 = vmatpush2.msra.mxu0 0.0
    %445 = vmatprep.subr.mxu0 0.0
    %446 = vmatpush2.msra.mxu0 0.0
    %447 = vmatprep.subr.mxu0 0.0
    %448 = vmatpush2.msra.mxu0 0.0
    %449 = vmatprep.subr.mxu0 0.0
    %450 = vmatpush2.msra.mxu0 0.0
    %451 = vmatprep.subr.mxu0 0.0
    %452 = vmatpush2.msra.mxu0 0.0
    %453 = vmatprep.subr.mxu0 0.0
    %454 = vmatpush2.msra.mxu0 0.0
    %455 = vmatprep.subr.mxu0 0.0
    %456 = vmatpush2.msra.mxu0 0.0
    %457 = vmatprep.subr.mxu0 0.0
    %458 = vmatpush2.msra.mxu0 0.0
    %459 = vmatprep.mubr.f32.mxu0 0.0
    %v460 = vand.u32 %v82, 4294901760
    %v461 = vsub.f32 %v82, %v460
    %462 = vmatmul.mubr.f32.gmra.mxu0 %v461
    %v463 = vpop.f32.mrf.mxu0
    %v464 = vadd.f32 %v342, %v463
    %v465 = vpop.f32.mrf.mxu0
    %466 = vmatprep.mubr.f32.mxu0 0.0
    %v467 = vand.u32 %v85, 4294901760
    %v468 = vsub.f32 %v85, %v467
    %469 = vmatmul.mubr.f32.gmra.mxu0 %v468
    %v470 = vpop.f32.mrf.mxu0
    %v471 = vadd.f32 %v348, %v470
    %v472 = vpop.f32.mrf.mxu0
    %473 = vmatprep.mubr.f32.mxu0 0.0
    %v474 = vand.u32 %v88, 4294901760
    %v475 = vsub.f32 %v88, %v474
    %476 = vmatmul.mubr.f32.gmra.mxu0 %v475
    %v477 = vpop.f32.mrf.mxu0
    %v478 = vadd.f32 %v354, %v477
    %v479 = vpop.f32.mrf.mxu0
    %480 = vmatprep.mubr.f32.mxu0 0.0
    %v481 = vand.u32 %v91, 4294901760
    %v482 = vsub.f32 %v91, %v481
    %483 = vmatmul.mubr.f32.gmra.mxu0 %v482
    %v484 = vpop.f32.mrf.mxu0
    %v485 = vadd.f32 %v360, %v484
    %v486 = vpop.f32.mrf.mxu0
    %487 = vmatprep.mubr.f32.mxu0 0.0
    %v488 = vand.u32 %v94, 4294901760
    %v489 = vsub.f32 %v94, %v488
    %490 = vmatmul.mubr.f32.gmra.mxu0 %v489
    %v491 = vpop.f32.mrf.mxu0
    %v492 = vadd.f32 %v366, %v491
    %v493 = vpop.f32.mrf.mxu0
    %494 = vmatprep.mubr.f32.mxu0 0.0
    %v495 = vand.u32 %v97, 4294901760
    %v496 = vsub.f32 %v97, %v495
    %497 = vmatmul.mubr.f32.gmra.mxu0 %v496
    %v498 = vpop.f32.mrf.mxu0
    %v499 = vadd.f32 %v372, %v498
    %v500 = vpop.f32.mrf.mxu0
    %501 = vmatprep.mubr.f32.mxu0 0.0
    %v502 = vand.u32 %v100, 4294901760
    %v503 = vsub.f32 %v100, %v502
    %504 = vmatmul.mubr.f32.gmra.mxu0 %v503
    %v505 = vpop.f32.mrf.mxu0
    %v506 = vadd.f32 %v378, %v505
    %v507 = vpop.f32.mrf.mxu0
    %508 = vmatprep.mubr.f32.mxu0 0.0
    %v509 = vand.u32 %v103, 4294901760
    %v510 = vsub.f32 %v103, %v509
    %511 = vmatmul.mubr.f32.gmra.mxu0 %v510
    %v512 = vpop.f32.mrf.mxu0
    %v513 = vadd.f32 %v384, %v512
    %v514 = vpop.f32.mrf.mxu0
    %515 = vdwg.mxu0
    %516 = vmatprep.subr.mxu0 0.0
    %517 = vmatpush1.msra.mxu0 0.0
    %518 = vmatprep.subr.mxu0 0.0
    %519 = vmatpush1.msra.mxu0 0.0
    %520 = vmatprep.subr.mxu0 0.0
    %521 = vmatpush1.msra.mxu0 0.0
    %522 = vmatprep.subr.mxu0 0.0
    %523 = vmatpush1.msra.mxu0 0.0
    %524 = vmatprep.subr.mxu0 0.0
    %525 = vmatpush1.msra.mxu0 0.0
    %526 = vmatprep.subr.mxu0 0.0
    %527 = vmatpush1.msra.mxu0 0.0
    %528 = vmatprep.subr.mxu0 0.0
    %529 = vmatpush1.msra.mxu0 0.0
    %530 = vmatprep.subr.mxu0 0.0
    %531 = vmatpush1.msra.mxu0 0.0
    %532 = vmatprep.subr.mxu0 0.0
    %533 = vmatpush1.msra.mxu0 0.0
    %534 = vmatprep.subr.mxu0 0.0
    %535 = vmatpush1.msra.mxu0 0.0
    %536 = vmatprep.subr.mxu0 0.0
    %537 = vmatpush1.msra.mxu0 0.0
    %538 = vmatprep.subr.mxu0 0.0
    %539 = vmatpush1.msra.mxu0 0.0
    %540 = vmatprep.subr.mxu0 0.0
    %v541 = vand.u32 %v21, 4294901760
    %542 = vmatpush1.msra.mxu0 %v541
    %543 = vmatprep.subr.mxu0 0.0
    %v544 = vand.u32 %v20, 4294901760
    %545 = vmatpush1.msra.mxu0 %v544
    %546 = vmatprep.subr.mxu0 0.0
    %v547 = vand.u32 %v19, 4294901760
    %548 = vmatpush1.msra.mxu0 %v547
    %549 = vmatprep.subr.mxu0 0.0
    %v550 = vand.u32 %v18, 4294901760
    %551 = vmatpush1.msra.mxu0 %v550
    %552 = vmatprep.subr.mxu0 0.0
    %553 = vmatpush2.msra.mxu0 0.0
    %554 = vmatprep.subr.mxu0 0.0
    %555 = vmatpush2.msra.mxu0 0.0
    %556 = vmatprep.subr.mxu0 0.0
    %557 = vmatpush2.msra.mxu0 0.0
    %558 = vmatprep.subr.mxu0 0.0
    %559 = vmatpush2.msra.mxu0 0.0
    %560 = vmatprep.subr.mxu0 0.0
    %561 = vmatpush2.msra.mxu0 0.0
    %562 = vmatprep.subr.mxu0 0.0
    %563 = vmatpush2.msra.mxu0 0.0
    %564 = vmatprep.subr.mxu0 0.0
    %565 = vmatpush2.msra.mxu0 0.0
    %566 = vmatprep.subr.mxu0 0.0
    %567 = vmatpush2.msra.mxu0 0.0
    %568 = vmatprep.subr.mxu0 0.0
    %569 = vmatpush2.msra.mxu0 0.0
    %570 = vmatprep.subr.mxu0 0.0
    %571 = vmatpush2.msra.mxu0 0.0
    %572 = vmatprep.subr.mxu0 0.0
    %573 = vmatpush2.msra.mxu0 0.0
    %574 = vmatprep.subr.mxu0 0.0
    %575 = vmatpush2.msra.mxu0 0.0
    %576 = vmatprep.subr.mxu0 0.0
    %577 = vmatpush2.msra.mxu0 0.0
    %578 = vmatprep.subr.mxu0 0.0
    %579 = vmatpush2.msra.mxu0 0.0
    %580 = vmatprep.subr.mxu0 0.0
    %581 = vmatpush2.msra.mxu0 0.0
    %582 = vmatprep.subr.mxu0 0.0
    %583 = vmatpush2.msra.mxu0 0.0
    %584 = vmatprep.mubr.f32.mxu0 0.0
    %v585 = vand.u32 %v82, 4294901760
    %v586 = vsub.f32 %v82, %v585
    %v587 = vand.u32 %v586, 4294901760
    %588 = vmatmul.mubr.f32.gmra.mxu0 %v587
    %v589 = vpop.f32.mrf.mxu0
    %v590 = vadd.f32 %v464, %v589
    %v591 = vpop.f32.mrf.mxu0
    %592 = vmatprep.mubr.f32.mxu0 0.0
    %v593 = vand.u32 %v85, 4294901760
    %v594 = vsub.f32 %v85, %v593
    %v595 = vand.u32 %v594, 4294901760
    %596 = vmatmul.mubr.f32.gmra.mxu0 %v595
    %v597 = vpop.f32.mrf.mxu0
    %v598 = vadd.f32 %v471, %v597
    %v599 = vpop.f32.mrf.mxu0
    %600 = vmatprep.mubr.f32.mxu0 0.0
    %v601 = vand.u32 %v88, 4294901760
    %v602 = vsub.f32 %v88, %v601
    %v603 = vand.u32 %v602, 4294901760
    %604 = vmatmul.mubr.f32.gmra.mxu0 %v603
    %v605 = vpop.f32.mrf.mxu0
    %v606 = vadd.f32 %v478, %v605
    %v607 = vpop.f32.mrf.mxu0
    %608 = vmatprep.mubr.f32.mxu0 0.0
    %v609 = vand.u32 %v91, 4294901760
    %v610 = vsub.f32 %v91, %v609
    %v611 = vand.u32 %v610, 4294901760
    %612 = vmatmul.mubr.f32.gmra.mxu0 %v611
    %v613 = vpop.f32.mrf.mxu0
    %v614 = vadd.f32 %v485, %v613
    %v615 = vpop.f32.mrf.mxu0
    %616 = vmatprep.mubr.f32.mxu0 0.0
    %v617 = vand.u32 %v94, 4294901760
    %v618 = vsub.f32 %v94, %v617
    %v619 = vand.u32 %v618, 4294901760
    %620 = vmatmul.mubr.f32.gmra.mxu0 %v619
    %v621 = vpop.f32.mrf.mxu0
    %v622 = vadd.f32 %v492, %v621
    %v623 = vpop.f32.mrf.mxu0
    %624 = vmatprep.mubr.f32.mxu0 0.0
    %v625 = vand.u32 %v97, 4294901760
    %v626 = vsub.f32 %v97, %v625
    %v627 = vand.u32 %v626, 4294901760
    %628 = vmatmul.mubr.f32.gmra.mxu0 %v627
    %v629 = vpop.f32.mrf.mxu0
    %v630 = vadd.f32 %v499, %v629
    %v631 = vpop.f32.mrf.mxu0
    %632 = vmatprep.mubr.f32.mxu0 0.0
    %v633 = vand.u32 %v100, 4294901760
    %v634 = vsub.f32 %v100, %v633
    %v635 = vand.u32 %v634, 4294901760
    %636 = vmatmul.mubr.f32.gmra.mxu0 %v635
    %v637 = vpop.f32.mrf.mxu0
    %v638 = vadd.f32 %v506, %v637
    %v639 = vpop.f32.mrf.mxu0
    %640 = vmatprep.mubr.f32.mxu0 0.0
    %v641 = vand.u32 %v103, 4294901760
    %v642 = vsub.f32 %v103, %v641
    %v643 = vand.u32 %v642, 4294901760
    %644 = vmatmul.mubr.f32.gmra.mxu0 %v643
    %v645 = vpop.f32.mrf.mxu0
    %v646 = vadd.f32 %v513, %v645
    %v647 = vpop.f32.mrf.mxu0
    %648 = vdwg.mxu0
    %649 = vmatprep.subr.mxu0 0.0
    %650 = vmatpush1.msra.mxu0 0.0
    %651 = vmatprep.subr.mxu0 0.0
    %652 = vmatpush1.msra.mxu0 0.0
    %653 = vmatprep.subr.mxu0 0.0
    %654 = vmatpush1.msra.mxu0 0.0
    %655 = vmatprep.subr.mxu0 0.0
    %656 = vmatpush1.msra.mxu0 0.0
    %657 = vmatprep.subr.mxu0 0.0
    %658 = vmatpush1.msra.mxu0 0.0
    %659 = vmatprep.subr.mxu0 0.0
    %660 = vmatpush1.msra.mxu0 0.0
    %661 = vmatprep.subr.mxu0 0.0
    %662 = vmatpush1.msra.mxu0 0.0
    %663 = vmatprep.subr.mxu0 0.0
    %664 = vmatpush1.msra.mxu0 0.0
    %665 = vmatprep.subr.mxu0 0.0
    %666 = vmatpush1.msra.mxu0 0.0
    %667 = vmatprep.subr.mxu0 0.0
    %668 = vmatpush1.msra.mxu0 0.0
    %669 = vmatprep.subr.mxu0 0.0
    %670 = vmatpush1.msra.mxu0 0.0
    %671 = vmatprep.subr.mxu0 0.0
    %672 = vmatpush1.msra.mxu0 0.0
    %673 = vmatprep.subr.mxu0 0.0
    %v674 = vand.u32 %v21, 4294901760
    %v675 = vsub.f32 %v21, %v674
    %v676 = vand.u32 %v675, 4294901760
    %677 = vmatpush1.msra.mxu0 %v676
    %678 = vmatprep.subr.mxu0 0.0
    %v679 = vand.u32 %v20, 4294901760
    %v680 = vsub.f32 %v20, %v679
    %v681 = vand.u32 %v680, 4294901760
    %682 = vmatpush1.msra.mxu0 %v681
    %683 = vmatprep.subr.mxu0 0.0
    %v684 = vand.u32 %v19, 4294901760
    %v685 = vsub.f32 %v19, %v684
    %v686 = vand.u32 %v685, 4294901760
    %687 = vmatpush1.msra.mxu0 %v686
    %688 = vmatprep.subr.mxu0 0.0
    %v689 = vand.u32 %v18, 4294901760
    %v690 = vsub.f32 %v18, %v689
    %v691 = vand.u32 %v690, 4294901760
    %692 = vmatpush1.msra.mxu0 %v691
    %693 = vmatprep.subr.mxu0 0.0
    %694 = vmatpush2.msra.mxu0 0.0
    %695 = vmatprep.subr.mxu0 0.0
    %696 = vmatpush2.msra.mxu0 0.0
    %697 = vmatprep.subr.mxu0 0.0
    %698 = vmatpush2.msra.mxu0 0.0
    %699 = vmatprep.subr.mxu0 0.0
    %700 = vmatpush2.msra.mxu0 0.0
    %701 = vmatprep.subr.mxu0 0.0
    %702 = vmatpush2.msra.mxu0 0.0
    %703 = vmatprep.subr.mxu0 0.0
    %704 = vmatpush2.msra.mxu0 0.0
    %705 = vmatprep.subr.mxu0 0.0
    %706 = vmatpush2.msra.mxu0 0.0
    %707 = vmatprep.subr.mxu0 0.0
    %708 = vmatpush2.msra.mxu0 0.0
    %709 = vmatprep.subr.mxu0 0.0
    %710 = vmatpush2.msra.mxu0 0.0
    %711 = vmatprep.subr.mxu0 0.0
    %712 = vmatpush2.msra.mxu0 0.0
    %713 = vmatprep.subr.mxu0 0.0
    %714 = vmatpush2.msra.mxu0 0.0
    %715 = vmatprep.subr.mxu0 0.0
    %716 = vmatpush2.msra.mxu0 0.0
    %717 = vmatprep.subr.mxu0 0.0
    %718 = vmatpush2.msra.mxu0 0.0
    %719 = vmatprep.subr.mxu0 0.0
    %720 = vmatpush2.msra.mxu0 0.0
    %721 = vmatprep.subr.mxu0 0.0
    %722 = vmatpush2.msra.mxu0 0.0
    %723 = vmatprep.subr.mxu0 0.0
    %724 = vmatpush2.msra.mxu0 0.0
    %725 = vmatprep.mubr.f32.mxu0 0.0
    %v726 = vand.u32 %v82, 4294901760
    %727 = vmatmul.mubr.f32.gmra.mxu0 %v726
    %v728 = vpop.f32.mrf.mxu0
    %v729 = vadd.f32 %v590, %v728
    %v730 = vpop.f32.mrf.mxu0
    %731 = vmatprep.mubr.f32.mxu0 0.0
    %v732 = vand.u32 %v85, 4294901760
    %733 = vmatmul.mubr.f32.gmra.mxu0 %v732
    %v734 = vpop.f32.mrf.mxu0
    %v735 = vadd.f32 %v598, %v734
    %v736 = vpop.f32.mrf.mxu0
    %737 = vmatprep.mubr.f32.mxu0 0.0
    %v738 = vand.u32 %v88, 4294901760
    %739 = vmatmul.mubr.f32.gmra.mxu0 %v738
    %v740 = vpop.f32.mrf.mxu0
    %v741 = vadd.f32 %v606, %v740
    %v742 = vpop.f32.mrf.mxu0
    %743 = vmatprep.mubr.f32.mxu0 0.0
    %v744 = vand.u32 %v91, 4294901760
    %745 = vmatmul.mubr.f32.gmra.mxu0 %v744
    %v746 = vpop.f32.mrf.mxu0
    %v747 = vadd.f32 %v614, %v746
    %v748 = vpop.f32.mrf.mxu0
    %749 = vmatprep.mubr.f32.mxu0 0.0
    %v750 = vand.u32 %v94, 4294901760
    %751 = vmatmul.mubr.f32.gmra.mxu0 %v750
    %v752 = vpop.f32.mrf.mxu0
    %v753 = vadd.f32 %v622, %v752
    %v754 = vpop.f32.mrf.mxu0
    %755 = vmatprep.mubr.f32.mxu0 0.0
    %v756 = vand.u32 %v97, 4294901760
    %757 = vmatmul.mubr.f32.gmra.mxu0 %v756
    %v758 = vpop.f32.mrf.mxu0
    %v759 = vadd.f32 %v630, %v758
    %v760 = vpop.f32.mrf.mxu0
    %761 = vmatprep.mubr.f32.mxu0 0.0
    %v762 = vand.u32 %v100, 4294901760
    %763 = vmatmul.mubr.f32.gmra.mxu0 %v762
    %v764 = vpop.f32.mrf.mxu0
    %v765 = vadd.f32 %v638, %v764
    %v766 = vpop.f32.mrf.mxu0
    %767 = vmatprep.mubr.f32.mxu0 0.0
    %v768 = vand.u32 %v103, 4294901760
    %769 = vmatmul.mubr.f32.gmra.mxu0 %v768
    %v770 = vpop.f32.mrf.mxu0
    %v771 = vadd.f32 %v646, %v770
    %v772 = vpop.f32.mrf.mxu0
    %773 = vdwg.mxu0
    %774 = vmatprep.subr.mxu0 0.0
    %775 = vmatpush1.msra.mxu0 0.0
    %776 = vmatprep.subr.mxu0 0.0
    %777 = vmatpush1.msra.mxu0 0.0
    %778 = vmatprep.subr.mxu0 0.0
    %779 = vmatpush1.msra.mxu0 0.0
    %780 = vmatprep.subr.mxu0 0.0
    %781 = vmatpush1.msra.mxu0 0.0
    %782 = vmatprep.subr.mxu0 0.0
    %783 = vmatpush1.msra.mxu0 0.0
    %784 = vmatprep.subr.mxu0 0.0
    %785 = vmatpush1.msra.mxu0 0.0
    %786 = vmatprep.subr.mxu0 0.0
    %787 = vmatpush1.msra.mxu0 0.0
    %788 = vmatprep.subr.mxu0 0.0
    %789 = vmatpush1.msra.mxu0 0.0
    %790 = vmatprep.subr.mxu0 0.0
    %791 = vmatpush1.msra.mxu0 0.0
    %792 = vmatprep.subr.mxu0 0.0
    %793 = vmatpush1.msra.mxu0 0.0
    %794 = vmatprep.subr.mxu0 0.0
    %795 = vmatpush1.msra.mxu0 0.0
    %796 = vmatprep.subr.mxu0 0.0
    %797 = vmatpush1.msra.mxu0 0.0
    %798 = vmatprep.subr.mxu0 0.0
    %v799 = vand.u32 %v21, 4294901760
    %800 = vmatpush1.msra.mxu0 %v799
    %801 = vmatprep.subr.mxu0 0.0
    %v802 = vand.u32 %v20, 4294901760
    %803 = vmatpush1.msra.mxu0 %v802
    %804 = vmatprep.subr.mxu0 0.0
    %v805 = vand.u32 %v19, 4294901760
    %806 = vmatpush1.msra.mxu0 %v805
    %807 = vmatprep.subr.mxu0 0.0
    %v808 = vand.u32 %v18, 4294901760
    %809 = vmatpush1.msra.mxu0 %v808
    %810 = vmatprep.subr.mxu0 0.0
    %811 = vmatpush2.msra.mxu0 0.0
    %812 = vmatprep.subr.mxu0 0.0
    %813 = vmatpush2.msra.mxu0 0.0
    %814 = vmatprep.subr.mxu0 0.0
    %815 = vmatpush2.msra.mxu0 0.0
    %816 = vmatprep.subr.mxu0 0.0
    %817 = vmatpush2.msra.mxu0 0.0
    %818 = vmatprep.subr.mxu0 0.0
    %819 = vmatpush2.msra.mxu0 0.0
    %820 = vmatprep.subr.mxu0 0.0
    %821 = vmatpush2.msra.mxu0 0.0
    %822 = vmatprep.subr.mxu0 0.0
    %823 = vmatpush2.msra.mxu0 0.0
    %824 = vmatprep.subr.mxu0 0.0
    %825 = vmatpush2.msra.mxu0 0.0
    %826 = vmatprep.subr.mxu0 0.0
    %827 = vmatpush2.msra.mxu0 0.0
    %828 = vmatprep.subr.mxu0 0.0
    %829 = vmatpush2.msra.mxu0 0.0
    %830 = vmatprep.subr.mxu0 0.0
    %831 = vmatpush2.msra.mxu0 0.0
    %832 = vmatprep.subr.mxu0 0.0
    %833 = vmatpush2.msra.mxu0 0.0
    %834 = vmatprep.subr.mxu0 0.0
    %835 = vmatpush2.msra.mxu0 0.0
    %836 = vmatprep.subr.mxu0 0.0
    %837 = vmatpush2.msra.mxu0 0.0
    %838 = vmatprep.subr.mxu0 0.0
    %839 = vmatpush2.msra.mxu0 0.0
    %840 = vmatprep.subr.mxu0 0.0
    %841 = vmatpush2.msra.mxu0 0.0
    %842 = vmatprep.mubr.f32.mxu0 0.0
    %v843 = vand.u32 %v82, 4294901760
    %844 = vmatmul.mubr.f32.gmra.mxu0 %v843
    %v845 = vpop.f32.mrf.mxu0
    %v846 = vadd.f32 %v729, %v845
    %v847 = vpop.f32.mrf.mxu0
    %848 = vmatprep.mubr.f32.mxu0 0.0
    %v849 = vand.u32 %v85, 4294901760
    %850 = vmatmul.mubr.f32.gmra.mxu0 %v849
    %v851 = vpop.f32.mrf.mxu0
    %v852 = vadd.f32 %v735, %v851
    %v853 = vpop.f32.mrf.mxu0
    %854 = vmatprep.mubr.f32.mxu0 0.0
    %v855 = vand.u32 %v88, 4294901760
    %856 = vmatmul.mubr.f32.gmra.mxu0 %v855
    %v857 = vpop.f32.mrf.mxu0
    %v858 = vadd.f32 %v741, %v857
    %v859 = vpop.f32.mrf.mxu0
    %860 = vmatprep.mubr.f32.mxu0 0.0
    %v861 = vand.u32 %v91, 4294901760
    %862 = vmatmul.mubr.f32.gmra.mxu0 %v861
    %v863 = vpop.f32.mrf.mxu0
    %v864 = vadd.f32 %v747, %v863
    %v865 = vpop.f32.mrf.mxu0
    %866 = vmatprep.mubr.f32.mxu0 0.0
    %v867 = vand.u32 %v94, 4294901760
    %868 = vmatmul.mubr.f32.gmra.mxu0 %v867
    %v869 = vpop.f32.mrf.mxu0
    %v870 = vadd.f32 %v753, %v869
    %v871 = vpop.f32.mrf.mxu0
    %872 = vmatprep.mubr.f32.mxu0 0.0
    %v873 = vand.u32 %v97, 4294901760
    %874 = vmatmul.mubr.f32.gmra.mxu0 %v873
    %v875 = vpop.f32.mrf.mxu0
    %v876 = vadd.f32 %v759, %v875
    %v877 = vpop.f32.mrf.mxu0
    %878 = vmatprep.mubr.f32.mxu0 0.0
    %v879 = vand.u32 %v100, 4294901760
    %880 = vmatmul.mubr.f32.gmra.mxu0 %v879
    %v881 = vpop.f32.mrf.mxu0
    %v882 = vadd.f32 %v765, %v881
    %v883 = vpop.f32.mrf.mxu0
    %884 = vmatprep.mubr.f32.mxu0 0.0
    %v885 = vand.u32 %v103, 4294901760
    %886 = vmatmul.mubr.f32.gmra.mxu0 %v885
    %v887 = vpop.f32.mrf.mxu0
    %v888 = vadd.f32 %v771, %v887
    %v889 = vpop.f32.mrf.mxu0
    %890 = vdwg.mxu0
    %v891 = vmul.f32 %v846, %v882
    %v892 = vmul.f32 %v852, %v888
    %v893 = vmul.f32 %v858, %v882
    %v894 = vmul.f32 %v864, %v888
    %v895 = vsel %vm80, %v891, 0.0
    %896 = vadd.xlane.f32.xlu0 %v895
    %v897 = vpop.xlane.xlu0 %896
    %v898 = vsel %vm80, %v892, 0.0
    %899 = vadd.xlane.f32.xlu0 %v898
    %v900 = vpop.xlane.xlu0 %899
    %v901 = vsel %vm80, %v893, 0.0
    %902 = vadd.xlane.f32.xlu0 %v901
    %v903 = vpop.xlane.xlu0 %902
    %v904 = vsel %vm80, %v894, 0.0
    %905 = vadd.xlane.f32.xlu0 %v904
    %v906 = vpop.xlane.xlu0 %905
    %v907 = vmul.f32 %v882, %v897
    %v908 = vmul.f32 %v888, %v900
    %v909 = vmul.f32 %v882, %v903
    %v910 = vmul.f32 %v888, %v906
    %v911 = vsub.f32 %v846, %v907
    %v912 = vsub.f32 %v852, %v908
    %v913 = vsub.f32 %v858, %v909
    %v914 = vsub.f32 %v864, %v910
    %v915 = vadd.f32 %v911, %v870
    %v916 = vadd.f32 %v912, %v876
    %v917 = vsub.f32 %v915, %v913
    %v918 = vsub.f32 %v916, %v914
    %v919 = vadd.f32 %v917, 1e-06
    %v920 = vadd.f32 %v918, 1e-06
    %v921 = vmul.f32 %v919, %v919
    %v922 = vmul.f32 %v920, %v920
    %v923 = vsel %vm80, %v921, 0.0
    %924 = vadd.xlane.f32.xlu0 %v923
    %v925 = vpop.xlane.xlu0 %924
    %v926 = vsel %vm80, %v922, 0.0
    %927 = vadd.xlane.f32.xlu0 %v926
    %v928 = vpop.xlane.xlu0 %927
    %v929 = vrsqrt.pop %v925
    %v930 = vmul.f32 %v925, %v929
    %vm931 = vcmp.eq.f32.partialorder %v925, inf
    %v932 = vsel %vm931, %v925, %v930
    %vm933 = vcmp.eq.f32.partialorder %v925, 0.0
    %v934 = vand.u32 %v925, 2147483648
    %v935 = vsel %vm933, %v934, %v932
    %v936 = vrsqrt.pop %v928
    %v937 = vmul.f32 %v928, %v936
    %vm938 = vcmp.eq.f32.partialorder %v928, inf
    %v939 = vsel %vm938, %v928, %v937
    %vm940 = vcmp.eq.f32.partialorder %v928, 0.0
    %v941 = vand.u32 %v928, 2147483648
    %v942 = vsel %vm940, %v941, %v939
    %v943 = vsub.f32 %v935, %v942
    %v944 = vadd.f32 %v943, 1.0
    %v945 = vmax.f32 %v944, 0.0
    %v946 = vmul.f32 %v18, %v18
    %v947 = vmul.f32 %v19, %v19
    %v948 = vmul.f32 %v20, %v21
    %v949 = vmul.f32 %v20, %v20
    %v950 = vsel %vm80, %v946, 0.0
    %951 = vadd.xlane.f32.xlu0 %v950
    %v952 = vpop.xlane.xlu0 %951
    %v953 = vsel %vm80, %v947, 0.0
    %954 = vadd.xlane.f32.xlu0 %v953
    %v955 = vpop.xlane.xlu0 %954
    %v956 = vsel %vm80, %v948, 0.0
    %957 = vadd.xlane.f32.xlu0 %v956
    %v958 = vpop.xlane.xlu0 %957
    %v959 = vsel %vm80, %v949, 0.0
    %960 = vadd.xlane.f32.xlu0 %v959
    %v961 = vpop.xlane.xlu0 %960
    %v962 = vrsqrt.pop %v952
    %v963 = vmul.f32 %v952, %v962
    %vm964 = vcmp.eq.f32.partialorder %v952, inf
    %v965 = vsel %vm964, %v952, %v963
    %vm966 = vcmp.eq.f32.partialorder %v952, 0.0
    %v967 = vand.u32 %v952, 2147483648
    %v968 = vsel %vm966, %v967, %v965
    %v969 = vrsqrt.pop %v955
    %v970 = vmul.f32 %v955, %v969
    %vm971 = vcmp.eq.f32.partialorder %v955, inf
    %v972 = vsel %vm971, %v955, %v970
    %vm973 = vcmp.eq.f32.partialorder %v955, 0.0
    %v974 = vand.u32 %v955, 2147483648
    %v975 = vsel %vm973, %v974, %v972
    %v976 = vsub.f32 %v968, 1.0
    %v977 = vsub.f32 %v975, 1.0
    %v978 = vmax.f32 %v976, 0.0
    %v979 = vmax.f32 %v977, 0.0
    %v980 = vrsqrt.pop %v961
    %v981 = vmul.f32 %v958, %v980
    %v982 = vsub.f32 %v981, 1e-06
    %v983 = vmax.f32 %v982, 0.0
    %v984 = vmul.f32 %v945, 0.125
    %v985 = vmul.f32 %v978, 0.0625
    %v986 = vmul.f32 %v979, 0.0625
    %v987 = vmul.f32 %v983, 0.125
    %vm988 = vcmask 7168
    %v989 = vsel %vm988, %v984, 0.0
    %v990 = vsel %vm988, %v985, 0.0
    %v991 = vadd.f32 %v989, %v990
    %v992 = vsel %vm988, %v986, 0.0
    %v993 = vadd.f32 %v991, %v992
    %v994 = vsel %vm988, %v987, 0.0
    %v995 = vadd.f32 %v993, %v994
    %996 = vadd.xlane.f32.xlu0 %v995
    %v997 = vpop.xlane.xlu0 %996
    %v998 = vrot.slane %v997, 4
    %v999 = vadd.f32 %v997, %v998
    %v1000 = vrot.slane %v999, 2
    %v1001 = vadd.f32 %v999, %v1000
    %v1002 = vrot.slane %v1001, 1
    %v1003 = vadd.f32 %v1001, %v1002
    %s1004 = vtos %v1003
    %s1005 = scalar_lea.smem [#allocation2], 0
    %1006 = sst [smem:[%s1005]] %s1004
    // Predicated region
    $region18: #{tpu_custom_call.1} parent=1 // pred_check
      _
    $region19: #{tpu_custom_call.1} parent=1 // pred_check_branch
      %1008 = sbr.rel (0) target = $region21
    $region20: #{tpu_custom_call.1} parent=1 // pred_region
      %s1010 = ssub.s32 16, 16
      %1011 = vsyncadd [#allocation3], %s1010
      %1014 = dma.smem_to_hbm [#allocation2], 16, %s4, [#allocation3]
    $region21: #{tpu_custom_call.1} parent=1 // pred_fallthru
      _
    // Predicated region
    $region22: #{tpu_custom_call.1} parent=1 // pred_check
      _
    $region23: #{tpu_custom_call.1} parent=1 // pred_check_branch
      %1016 = sbr.rel (0) target = $region25
    $region24: #{tpu_custom_call.1} parent=1 // pred_region
      %1017 = dma.done [#allocation3], 16
    $region25: #{tpu_custom_call.1} parent=1 // pred_fallthru
      _
    %1018 = sfence
    %1019 = vsyncpa [#allocation3], 1

</llo_original>
